<compile_context>
chip_gen: v5e
topology: v5e:2x2
jax: 0.10.0
libtpu: 0.0.40
codegen_flags: <defaults>
</compile_context>

<pallas_src>
import jax
import jax.numpy as jnp
from jax.experimental import pallas as pl
from jax.experimental.pallas import tpu as pltpu

_LANES = 128
_SUBLANES = 8
_NUM_SPLITS = 2          # leading "parallel" grid axis (v7x has 2 TensorCores)
_EPS = 1e-6


def _vmem_capacity_bytes():
    """Physical VMEM of the local TPU; conservative fallback if unknown."""
    try:
        info = pltpu.get_tpu_info()
        cap = getattr(info, "vmem_capacity_bytes", None)
        if cap:
            return int(cap)
    except Exception:
        pass
    return 64 << 20      # v7x per-TC size: safe lower bound everywhere


def _make_kernel(tile_rows, acc_rows, steps_per_split, last_block,
                 valid_rows_last, has_pad_block, eps):
    """Charbonnier partial-sum kernel for a fixed (static) tiling."""
    folds = tile_rows // acc_rows
    need_row_mask = valid_rows_last != tile_rows

    def kernel(x_ref, y_ref, o_ref):
        c = pl.program_id(0)          # parallel split (TensorCore on v7x)
        i = pl.program_id(1)          # reduction step within the split

        @pl.when(i == 0)
        def _init():
            o_ref[...] = jnp.zeros_like(o_ref)

        x = x_ref[...].astype(jnp.float32)
        y = y_ref[...].astype(jnp.float32)
        d = x - y
        val = jnp.sqrt(d * d + jnp.float32(eps))      # (tile_rows, 128) f32

        def accumulate(v):
            # Fold the tile into the resident (acc_rows, 128) partial with
            # pure VPU adds; the cross-lane reduce happens once in the wrapper.
            if folds == 1:
                o_ref[...] += v
            else:
                o_ref[...] += jnp.sum(
                    v.reshape(folds, acc_rows, _LANES), axis=0)

        if need_row_mask or has_pad_block:
            gb = c * steps_per_split + i              # global block index

            if need_row_mask:
                @pl.when(gb < last_block)
                def _steady():
                    accumulate(val)

                @pl.when(gb == last_block)
                def _tail():
                    # Mask rows beyond the array (garbage). Select happens
                    # AFTER the compute on purpose (OOB data may be NaN/Inf).
                    row = jax.lax.broadcasted_iota(
                        jnp.int32, (tile_rows, _LANES), 0)
                    accumulate(jnp.where(row < valid_rows_last, val, 0.0))
            else:
                # Only duplicate/padding blocks (gb > last_block) are skipped.
                @pl.when(gb <= last_block)
                def _valid():
                    accumulate(val)
        else:
            accumulate(val)

    return kernel


def charbonnier_loss(x, y, *, eps=_EPS):
    """sum(sqrt((x - y)**2 + eps)); matches the PyTorch CharbonnierLoss module."""
    assert x.shape == y.shape, "x and y must have the same shape"
    n = int(x.size)
    if n == 0:
        return jnp.float32(0.0)

    xf = jnp.ravel(x)     # free for contiguous inputs
    yf = jnp.ravel(y)

    rows = n // _LANES
    n_main = rows * _LANES

    # < 128-element lane tail: computed in the wrapper (no full-tensor pad copy).
    tail_sum = jnp.float32(0.0)
    if n_main < n:
        dt = xf[n_main:].astype(jnp.float32) - yf[n_main:].astype(jnp.float32)
        tail_sum = jnp.sum(jnp.sqrt(dt * dt + jnp.float32(eps)))

    if rows == 0:
        # Entire array smaller than one 128-lane row; nothing for the kernel.
        return tail_sum

    x2d = xf[:n_main].reshape(rows, _LANES)
    y2d = yf[:n_main].reshape(rows, _LANES)

    itembytes = jnp.dtype(x.dtype).itemsize + jnp.dtype(y.dtype).itemsize
    bytes_per_row = _LANES * itembytes

    # Generation-aware input-buffer budget (2 pipeline buffers, both inputs):
    # v5e/v6e (128 MiB VMEM) -> 32 MiB; v7x / unknown (64 MiB) -> 16 MiB.
    vmem_cap = _vmem_capacity_bytes()
    input_budget = (32 << 20) if vmem_cap >= (100 << 20) else (16 << 20)

    target_tr = input_budget // (2 * bytes_per_row)   # rows per block
    target_tr = max(64, (target_tr // 64) * 64)

    # Cap the block so both halves of the parallel axis get work; multiple of 8.
    half_rows = (rows + _NUM_SPLITS - 1) // _NUM_SPLITS
    tr_cap = max(_SUBLANES,
                 ((half_rows + _SUBLANES - 1) // _SUBLANES) * _SUBLANES)
    tr = min(target_tr, tr_cap)

    total_blocks = (rows + tr - 1) // tr
    steps_per_split = (total_blocks + _NUM_SPLITS - 1) // _NUM_SPLITS
    last_block = total_blocks - 1
    valid_rows_last = rows - last_block * tr
    has_pad_block = (_NUM_SPLITS * steps_per_split != total_blocks)

    # Wider resident accumulator when the tile allows (shorter add chains).
    acc_rows = 64 if tr % 64 == 0 else _SUBLANES

    if has_pad_block:
        # Clamp so the (at most one) padding block never indexes out of bounds;
        # the kernel skips accumulating it via the global-block-index guard.
        def in_map(c, i):
            return (jnp.minimum(c * steps_per_split + i, last_block), 0)
    else:
        def in_map(c, i):
            return (c * steps_per_split + i, 0)

    # Input double-buffering + headroom for fused f32 intermediates/output.
    vmem_limit = int(min(2 * tr * bytes_per_row + (24 << 20),
                         max(32 << 20, vmem_cap // 2)))

    out = pl.pallas_call(
        _make_kernel(tr, acc_rows, steps_per_split, last_block,
                     valid_rows_last, has_pad_block, eps),
        out_shape=jax.ShapeDtypeStruct((_NUM_SPLITS, acc_rows, _LANES),
                                       jnp.float32),
        grid_spec=pltpu.PrefetchScalarGridSpec(
            num_scalar_prefetch=0,
            grid=(_NUM_SPLITS, steps_per_split),
            in_specs=[
                pl.BlockSpec((tr, _LANES), in_map),
                pl.BlockSpec((tr, _LANES), in_map),
            ],
            out_specs=pl.BlockSpec((None, acc_rows, _LANES),
                                   lambda c, i: (c, 0, 0)),
        ),
        compiler_params=pltpu.CompilerParams(
            dimension_semantics=("parallel", "arbitrary"),
            vmem_limit_bytes=vmem_limit,
        ),
        cost_estimate=pl.CostEstimate(
            flops=3 * n_main,
            transcendentals=n_main,
            bytes_accessed=n_main * itembytes
            + _NUM_SPLITS * acc_rows * _LANES * 4,
        ),
    )(x2d, y2d)

    # Final reduce of the resident partial sums + wrapper lane tail.
    return jnp.sum(out) + tail_sum


if __name__ == "__main__":
    key = jax.random.PRNGKey(0)
    kx, ky = jax.random.split(key)

    # NCHW, small shapes: batch=2, channels=4, spatial=16x16.
    x = jax.random.normal(kx, (2, 4, 16, 16), dtype=jnp.float32)
    y = jax.random.normal(ky, (2, 4, 16, 16), dtype=jnp.float32)

    loss = jax.block_until_ready(jax.jit(charbonnier_loss)(x, y))
    d = x - y
    ref = jnp.sum(jnp.sqrt(d * d + _EPS))
    assert jnp.allclose(loss, ref, rtol=1e-5, atol=1e-3), (loss, ref)

    # Ragged size (n not a multiple of 128): exercises the wrapper lane tail
    # and the in-kernel last-block row mask.
    xr = jax.random.normal(kx, (2, 3, 15, 17), dtype=jnp.float32)
    yr = jax.random.normal(ky, (2, 3, 15, 17), dtype=jnp.float32)
    loss_r = jax.block_until_ready(jax.jit(charbonnier_loss)(xr, yr))
    dr = xr - yr
    ref_r = jnp.sum(jnp.sqrt(dr * dr + _EPS))
    assert jnp.allclose(loss_r, ref_r, rtol=1e-5, atol=1e-3), (loss_r, ref_r)

    print("KERNEL_OK")
</pallas_src>

<mosaic_0001>
module attributes {stable_mosaic.version = 11 : i64} {
  func.func @kernel(%arg0: i32, %arg1: i32, %arg2: memref<8x128xf32, #tpu.memory_space<vmem>>, %arg3: memref<8x128xf32, #tpu.memory_space<vmem>>, %arg4: memref<1x8x128xf32, #tpu.memory_space<vmem>>) attributes {dimension_semantics = [#tpu.dimension_semantics<parallel>, #tpu.dimension_semantics<arbitrary>], iteration_bounds = array<i64: 2, 1>, scalar_prefetch = 0 : i64, scratch_operands = 0 : i64, tpu.core_type = #tpu.core_type<tc>, window_params = [{transform_indices = @transform_0, window_bounds = array<i64: 8, 128>}, {transform_indices = @transform_1, window_bounds = array<i64: 8, 128>}, {transform_indices = @transform_2, window_bounds = array<i64: 1, 8, 128>}]} {
    %c0_i32 = arith.constant 0 : i32
    %0 = arith.cmpi eq, %arg1, %c0_i32 : i32
    %1 = arith.extui %0 : i1 to i32
    %c0_i32_0 = arith.constant 0 : i32
    %2 = arith.cmpi ne, %1, %c0_i32_0 : i32
    scf.if %2 {
      %cst_10 = arith.constant 0.000000e+00 : f32
      %16 = vector.broadcast %cst_10 : f32 to vector<8x128xf32>
      %c0_11 = arith.constant 0 : index
      %c0_12 = arith.constant 0 : index
      %c0_13 = arith.constant 0 : index
      %17 = vector.load %arg4[%c0_11, %c0_12, %c0_13] : memref<1x8x128xf32, #tpu.memory_space<vmem>>, vector<1x8x128xf32>
      %18 = vector.shape_cast %17 : vector<1x8x128xf32> to vector<8x128xf32>
      %19 = vector.shape_cast %16 : vector<8x128xf32> to vector<1x8x128xf32>
      tpu.vector_store %arg4[%c0_11, %c0_12, %c0_13], %19 {strides = array<i32>} : memref<1x8x128xf32, #tpu.memory_space<vmem>>, vector<1x8x128xf32>,
    } else {
    }
    %c0 = arith.constant 0 : index
    %c0_1 = arith.constant 0 : index
    %3 = vector.load %arg2[%c0, %c0_1] : memref<8x128xf32, #tpu.memory_space<vmem>>, vector<8x128xf32>
    %c0_2 = arith.constant 0 : index
    %c0_3 = arith.constant 0 : index
    %4 = vector.load %arg3[%c0_2, %c0_3] : memref<8x128xf32, #tpu.memory_space<vmem>>, vector<8x128xf32>
    %5 = arith.subf %3, %4 : vector<8x128xf32>
    %6 = arith.mulf %5, %5 : vector<8x128xf32>
    %cst = arith.constant 9.99999997E-7 : f32
    %7 = vector.broadcast %cst : f32 to vector<8x128xf32>
    %8 = arith.addf %6, %7 : vector<8x128xf32>
    %9 = math.sqrt %8 : vector<8x128xf32>
    %c0_4 = arith.constant 0 : index
    %c0_5 = arith.constant 0 : index
    %c0_6 = arith.constant 0 : index
    %10 = vector.load %arg4[%c0_4, %c0_5, %c0_6] : memref<1x8x128xf32, #tpu.memory_space<vmem>>, vector<1x8x128xf32>
    %11 = vector.shape_cast %10 : vector<1x8x128xf32> to vector<8x128xf32>
    %12 = arith.addf %11, %9 : vector<8x128xf32>
    %c0_7 = arith.constant 0 : index
    %c0_8 = arith.constant 0 : index
    %c0_9 = arith.constant 0 : index
    %13 = vector.load %arg4[%c0_7, %c0_8, %c0_9] : memref<1x8x128xf32, #tpu.memory_space<vmem>>, vector<1x8x128xf32>
    %14 = vector.shape_cast %13 : vector<1x8x128xf32> to vector<8x128xf32>
    %15 = vector.shape_cast %12 : vector<8x128xf32> to vector<1x8x128xf32>
    tpu.vector_store %arg4[%c0_7, %c0_8, %c0_9], %15 {strides = array<i32>} : memref<1x8x128xf32, #tpu.memory_space<vmem>>, vector<1x8x128xf32>,
    return
  }
  func.func @transform_0(%arg0: i32, %arg1: i32) -> (i32, i32) {
    %c1_i32 = arith.constant 1 : i32
    %0 = arith.muli %arg0, %c1_i32 : i32
    %1 = arith.addi %0, %arg1 : i32
    %c0_i32 = arith.constant 0 : i32
    %c0_i32_0 = arith.constant 0 : i32
    return %1, %c0_i32 : i32, i32
  }
  func.func @transform_1(%arg0: i32, %arg1: i32) -> (i32, i32) {
    %c1_i32 = arith.constant 1 : i32
    %0 = arith.muli %arg0, %c1_i32 : i32
    %1 = arith.addi %0, %arg1 : i32
    %c0_i32 = arith.constant 0 : i32
    %c0_i32_0 = arith.constant 0 : i32
    return %1, %c0_i32 : i32, i32
  }
  func.func @transform_2(%arg0: i32, %arg1: i32) -> (i32, i32, i32) {
    %c0_i32 = arith.constant 0 : i32
    %c0_i32_0 = arith.constant 0 : i32
    %c0_i32_1 = arith.constant 0 : i32
    return %arg0, %c0_i32, %c0_i32_0 : i32, i32, i32
  }
}

</mosaic_0001>

<llo_original>
// kernel: charbonnier_loss.1
$region0: #{charbonnier_loss.1}
  #allocation0 [shape = 'u32[]', space=smem, size = 0x4, offset = 0x4, fixed_abs, tag = 'smem constant byte address 0x4 - core index']
  #allocation1 [shape = 'u32[72,128]{1,0:T(1,128)}', space=vmem, size = 0x9000, scoped, tag = 'internal scratch']
  %s0 = inlined_call_operand.vmem [shape: f32[16,128], index: 0, kind: input, shape index: {}]
  %s1 = inlined_call_operand.vmem [shape: f32[16,128], index: 1, kind: input, shape index: {}]
  %s2 = inlined_call_operand.vmem [shape: f32[2,8,128], index: 2, kind: output, shape index: {}]
  %s3 = sld [smem:[#allocation0]]
  $region45: #{charbonnier_loss.1} parent=0
    _
  %s5 = ssub.s32 1, %s3
  %s6 = scalar_select 0, %s5, %s3
  loop: start=0, step=1, limit=4
  $region2: #{charbonnier_loss.1} parent=0 // loop_pre_header
    _
  $region3: #{charbonnier_loss.1} parent=0 // loop_header
    %s8 = sphi 0, %s12
    %p9 = scmp.ge.s32.totalorder %s8, 4
    %s15 = sphi 0, %s27
    %s16 = sphi 0, %s23
    %s17 = sphi 0, %s15
    %s18 = sphi 0, %s16
    %s19 = sphi 0, %s17
    %s20 = sphi 0, %s18
    %s32 = sphi 0, %s34
    %s35 = sphi 0, %s32
    %s36 = sphi 0, %s35
    %s52 = sphi 0, %s36
    %s60 = sphi 0, %s62
    %s63 = sphi 0, %s60
    %s64 = sphi 0, %s63
    %s80 = sphi 0, %s64
    %s86 = sphi 0, %s88
    %s89 = sphi 0, %s86
    %s90 = sphi 0, %s89
    %s106 = sphi 0, %s90
  $region4: #{charbonnier_loss.1} parent=0 // loop_header_branch
    %11 = sbr.rel (%p9) target = $region8
  $region5: #{charbonnier_loss.1} parent=0 // loop_body
    %s13 = ssub.s32 %s8, 1
    %s14 = ssub.s32 %s8, 2
    %s21 = sadd.s32 1, %s16
    %p22 = scmp.ge.s32.totalorder %s21, 1
    %s23 = scalar_select %p22, 0, %s21
    %s24 = sadd.s32 1, %s15
    %s25 = scalar_select %p22, %s24, %s15
    %p26 = scmp.ge.s32.totalorder %s25, 2
    %s27 = scalar_select %p26, 0, %s25
    %s28 = sadd.s32 %s15, %s16
    %s29 = sadd.s32 %s27, %s23
    %s30 = ssub.s32 %s28, %s29
    %p31 = scmp.eq.s32.totalorder %s30, 0
    %s33 = sadd.s32 %s32, 1
    %s34 = scalar_select %p31, %s32, %s33
    %p37 = pneg %p31
    %p38 = scmp.eq.s32.totalorder %s8, 1
    %p39 = por %p37, %p38
    %p40 = scmp.ne.s32.totalorder %s32, %s35
    %p41 = scmp.eq.s32.totalorder %s8, 0
    %p42 = por %p40, %p41
    %p43 = scmp.ne.s32.totalorder %s32, %s35
    %p44 = scmp.eq.s32.totalorder %s13, 1
    %p45 = por %p43, %p44
    %p46 = scmp.ne.s32.totalorder %s35, %s36
    %p47 = scmp.eq.s32.totalorder %s13, 0
    %p48 = por %p46, %p47
    %p49 = scmp.ne.s32.totalorder %s35, %s36
    %p50 = scmp.eq.s32.totalorder %s14, 1
    %p51 = por %p49, %p50
    %p53 = scmp.ne.s32.totalorder %s36, %s52
    %p54 = scmp.eq.s32.totalorder %s14, 0
    %p55 = por %p53, %p54
    %s56 = sadd.s32 %s15, %s16
    %s57 = sadd.s32 %s27, %s23
    %s58 = ssub.s32 %s56, %s57
    %p59 = scmp.eq.s32.totalorder %s58, 0
    %s61 = sadd.s32 %s60, 1
    %s62 = scalar_select %p59, %s60, %s61
    %p65 = pneg %p59
    %p66 = scmp.eq.s32.totalorder %s8, 1
    %p67 = por %p65, %p66
    %p68 = scmp.ne.s32.totalorder %s60, %s63
    %p69 = scmp.eq.s32.totalorder %s8, 0
    %p70 = por %p68, %p69
    %p71 = scmp.ne.s32.totalorder %s60, %s63
    %p72 = scmp.eq.s32.totalorder %s13, 1
    %p73 = por %p71, %p72
    %p74 = scmp.ne.s32.totalorder %s63, %s64
    %p75 = scmp.eq.s32.totalorder %s13, 0
    %p76 = por %p74, %p75
    %p77 = scmp.ne.s32.totalorder %s63, %s64
    %p78 = scmp.eq.s32.totalorder %s14, 1
    %p79 = por %p77, %p78
    %p81 = scmp.ne.s32.totalorder %s64, %s80
    %p82 = scmp.eq.s32.totalorder %s14, 0
    %p83 = por %p81, %p82
    %s84 = ssub.s32 %s15, %s27
    %p85 = scmp.eq.s32.totalorder %s84, 0
    %s87 = sadd.s32 %s86, 1
    %s88 = scalar_select %p85, %s86, %s87
    %p91 = pneg %p85
    %p92 = scmp.eq.s32.totalorder %s8, 1
    %p93 = por %p91, %p92
    %p94 = scmp.ne.s32.totalorder %s86, %s89
    %p95 = scmp.eq.s32.totalorder %s8, 0
    %p96 = por %p94, %p95
    %p97 = scmp.ne.s32.totalorder %s86, %s89
    %p98 = scmp.eq.s32.totalorder %s13, 1
    %p99 = por %p97, %p98
    %p100 = scmp.ne.s32.totalorder %s89, %s90
    %p101 = scmp.eq.s32.totalorder %s13, 0
    %p102 = por %p100, %p101
    %p103 = scmp.ne.s32.totalorder %s89, %s90
    %p104 = scmp.eq.s32.totalorder %s14, 1
    %p105 = por %p103, %p104
    %p107 = scmp.ne.s32.totalorder %s90, %s106
    %p108 = scmp.eq.s32.totalorder %s14, 0
    %p109 = por %p107, %p108
    %p110 = scmp.le.s32.totalorder 1, %s8
    %p111 = scmp.lt.s32.totalorder %s8, 3
    %p112 = pnand %p110, %p111
    %p113 = pneg %p112
    // Predicated region
    $region9: #{charbonnier_loss.1} parent=5 // pred_check
      _
    $region10: #{charbonnier_loss.1} parent=5 // pred_check_branch
      %115 = sbr.rel (%p112) target = $region12
    $region11: #{charbonnier_loss.1} parent=5 // pred_region
      %s116 = ssub.s32 %s8, 1
    $region12: #{charbonnier_loss.1} parent=5 // pred_fallthru
      _
    %p117 = scmp.lt.s32.totalorder %s8, 2
    // Predicated region
    $region13: #{charbonnier_loss.1} parent=5 // pred_check
      %p118 = pneg %p117
    $region14: #{charbonnier_loss.1} parent=5 // pred_check_branch
      %120 = sbr.rel (%p118) target = $region16
    $region15: #{charbonnier_loss.1} parent=5 // pred_region
      // Predicated region
      $region17: #{charbonnier_loss.1} parent=15 // pred_check
        %p121 = pneg %p42
      $region18: #{charbonnier_loss.1} parent=15 // pred_check_branch
        %123 = sbr.rel (%p121) target = $region20
      $region19: #{charbonnier_loss.1} parent=15 // pred_region
        %s124 = sadd.s32 %s15, %s16
        %p125 = scmp.lt.s32.totalorder %s124, 1
        %s126 = scalar_select %p125, %s124, 1
        %s127 = smul.addr %s126, 8
        %s128 = scalar_lea.vmem %s0, %s127
        %s129 = sadd.s32 %s15, %s16
      $region20: #{charbonnier_loss.1} parent=15 // pred_fallthru
        _
      // Predicated region
      $region21: #{charbonnier_loss.1} parent=15 // pred_check
        %p130 = pneg %p70
      $region22: #{charbonnier_loss.1} parent=15 // pred_check_branch
        %132 = sbr.rel (%p130) target = $region24
      $region23: #{charbonnier_loss.1} parent=15 // pred_region
        %s133 = sadd.s32 %s15, %s16
        %p134 = scmp.lt.s32.totalorder %s133, 1
        %s135 = scalar_select %p134, %s133, 1
        %s136 = smul.addr %s135, 8
        %s137 = scalar_lea.vmem %s1, %s136
        %s138 = sadd.s32 %s15, %s16
      $region24: #{charbonnier_loss.1} parent=15 // pred_fallthru
        _
    $region16: #{charbonnier_loss.1} parent=5 // pred_fallthru
      _
    %p139 = scmp.le.s32.totalorder 1, %s8
    %p140 = scmp.lt.s32.totalorder %s8, 3
    %p141 = pnand %p139, %p140
    %p142 = pneg %p141
    // Predicated region
    $region25: #{charbonnier_loss.1} parent=5 // pred_check
      _
    $region26: #{charbonnier_loss.1} parent=5 // pred_check_branch
      %144 = sbr.rel (%p141) target = $region28
    $region27: #{charbonnier_loss.1} parent=5 // pred_region
      %s145 = ssub.s32 %s8, 1
      %s146 = sadd.s32 %s17, %s18
      %p147 = scmp.lt.s32.totalorder %s146, 1
      %s148 = scalar_select %p147, %s146, 1
      %s149 = smul.addr %s148, 8
      %s150 = scalar_lea.vmem %s0, %s149
      %p151 = pneg %p48
      %p152 = pneg %p45
      %s153 = sadd.s32 %s17, %s18
      %p154 = scmp.lt.s32.totalorder %s153, 1
      %s155 = scalar_select %p154, %s153, 1
      %s156 = smul.addr %s155, 8
      %s157 = scalar_lea.vmem %s1, %s156
      %p158 = pneg %p76
      %p159 = pneg %p73
      %p160 = pneg %p102
      %p161 = pneg %p99
      %p162 = scmp.lt.s32.totalorder %s17, 1
      %s163 = scalar_select %p162, %s17, 1
      %s164 = smul.addr %s163, 8
      %s165 = scalar_lea.vmem %s2, %s164
      %s166 = sadd.s32 %s17, %s18
      %p167 = scmp.lt.s32.totalorder %s166, 1
      %s168 = scalar_select %p167, %s166, 1
      %s169 = smul.addr %s168, 8
      %s170 = scalar_lea.vmem %s0, %s169
      %s171 = sadd.s32 %s17, %s18
      %s172 = sadd.s32 %s17, %s18
      %p173 = scmp.lt.s32.totalorder %s172, 1
      %s174 = scalar_select %p173, %s172, 1
      %s175 = smul.addr %s174, 8
      %s176 = scalar_lea.vmem %s1, %s175
      %s177 = sadd.s32 %s17, %s18
      %p178 = scmp.lt.s32.totalorder %s17, 1
      %s179 = scalar_select %p178, %s17, 1
      %s180 = smul.addr %s179, 8
      %s181 = scalar_lea.vmem %s2, %s180
      %p182 = scmp.eq.s32.totalorder %s18, 0
      // Predicated region
      $region29: #{charbonnier_loss.1} parent=27 // pred_check
        %p183 = pneg %p182
      $region30: #{charbonnier_loss.1} parent=27 // pred_check_branch
        %185 = sbr.rel (%p183) target = $region32
      $region31: #{charbonnier_loss.1} parent=27 // pred_region
        %186 = vst [vmem:[%s181] sm:$0xff] 0.0
      $region32: #{charbonnier_loss.1} parent=27 // pred_fallthru
        _
      %v187 = vld [vmem:[%s170] sm:$0xff]
      %v188 = vld [vmem:[%s176] sm:$0xff]
      %v189 = vsub.f32 %v187, %v188
      %v190 = vmul.f32 %v189, %v189
      %v191 = vadd.f32 %v190, 1e-06
      %v192 = vrsqrt.pop %v191
      %v193 = vmul.f32 %v192, %v191
      %v194 = vmul.f32 %v193, %v192
      %v195 = vmul.f32 0.5, %v194
      %v196 = vsub.f32 1.5, %v195
      %v197 = vmul.f32 %v192, %v196
      %v198 = vmul.f32 %v191, %v197
      %vm199 = vcmp.eq.f32.partialorder %v191, inf
      %v200 = vsel %vm199, %v191, %v198
      %vm201 = vcmp.eq.f32.partialorder %v191, 0.0
      %v202 = vand.u32 %v191, 2147483648
      %v203 = vsel %vm201, %v202, %v200
      %v204 = vld [vmem:[%s181] sm:$0xff]
      %v205 = vadd.f32 %v204, %v203
      %206 = vst [vmem:[%s181] sm:$0xff] %v205
      %p207 = scmp.lt.s32.totalorder %s17, 1
      %s208 = scalar_select %p207, %s17, 1
      %s209 = smul.addr %s208, 8
      %s210 = scalar_lea.vmem %s2, %s209
      // Predicated region
      $region33: #{charbonnier_loss.1} parent=27 // pred_check
        %p211 = pneg %p99
      $region34: #{charbonnier_loss.1} parent=27 // pred_check_branch
        %213 = sbr.rel (%p211) target = $region36
      $region35: #{charbonnier_loss.1} parent=27 // pred_region
        _
      $region36: #{charbonnier_loss.1} parent=27 // pred_fallthru
        _
    $region28: #{charbonnier_loss.1} parent=5 // pred_fallthru
      _
    %p214 = scmp.le.s32.totalorder 2, %s8
    // Predicated region
    $region37: #{charbonnier_loss.1} parent=5 // pred_check
      %p215 = pneg %p214
    $region38: #{charbonnier_loss.1} parent=5 // pred_check_branch
      %217 = sbr.rel (%p215) target = $region40
    $region39: #{charbonnier_loss.1} parent=5 // pred_region
      %s218 = ssub.s32 %s8, 2
      // Predicated region
      $region41: #{charbonnier_loss.1} parent=39 // pred_check
        %p219 = pneg %p105
      $region42: #{charbonnier_loss.1} parent=39 // pred_check_branch
        %221 = sbr.rel (%p219) target = $region44
      $region43: #{charbonnier_loss.1} parent=39 // pred_region
        %p222 = scmp.lt.s32.totalorder %s19, 1
        %s223 = scalar_select %p222, %s19, 1
        %s224 = smul.addr %s223, 8
        %s225 = scalar_lea.vmem %s2, %s224
      $region44: #{charbonnier_loss.1} parent=39 // pred_fallthru
        _
    $region40: #{charbonnier_loss.1} parent=5 // pred_fallthru
      _
  $region6: #{charbonnier_loss.1} parent=0 // loop_footer
    %s12 = sadd.s32 1, %s8
  $region7: #{charbonnier_loss.1} parent=0 // loop_footer_branch
    %7 = sbr.rel target = $region3
  $region8: #{charbonnier_loss.1} parent=0 // loop_exit
    _

</llo_original>
